<compile_context>
chip_gen: v5e
topology: v5e:2x2
jax: 0.10.0
libtpu: 0.0.40
codegen_flags: <defaults>
</compile_context>

<pallas_src>
import jax
import jax.numpy as jnp
from jax.experimental import pallas as pl
from jax.experimental.pallas import tpu as pltpu


def _round_up(v, m):
    return -(-v // m) * m


def fm_mlp_kernel(x_ref, wcat_ref, lin_ref, v2neg_ref, b1_ref, w2_ref,
                  bias_ref, out_ref):
    # x_ref:     (TB, I)     bf16 batch tile (bit-vector input; exact in bf16)
    # wcat_ref:  (I, H + F)  bf16 [W1^T | sqrt(0.5)*V]
    # lin_ref:   (1, I)      f32  W_lin
    # v2neg_ref: (1, I)      f32  -0.5 * sum_f V[i,f]^2
    # b1_ref:    (1, H)      f32
    # w2_ref:    (1, H)      f32
    # bias_ref:  (1, 1)      f32  b_lin + b2
    # out_ref:   (TB, 1)     f32
    H = b1_ref.shape[-1]

    x_mxu = x_ref[...]                       # bf16, feeds the MXU
    x = x_mxu.astype(jnp.float32)            # f32 for all VPU math

    # ---- single fused MXU matmul -> (TB, H + F), f32 accumulation ---------
    y = jnp.dot(x_mxu, wcat_ref[...], preferred_element_type=jnp.float32)
    h_pre = y[:, :H]                         # (TB, H)   tile-aligned slice
    xv = y[:, H:]                            # (TB, F)   x @ (sqrt(0.5)*V)

    # ---- MLP head (Dropout p=0.2 -> identity in eval) ----------------------
    h = jnp.maximum(h_pre + b1_ref[...], 0.0)                         # (TB, H)
    mlp = jnp.sum(h * w2_ref[...], axis=-1, keepdims=True)            # (TB, 1)

    # ---- FM: 0.5*sum(xv^2) already carried by the sqrt(0.5) folding --------
    sq_half = jnp.sum(xv * xv, axis=-1, keepdims=True)                # (TB, 1)

    # ---- fused linear term + (-0.5)*sum_of_squares term --------------------
    fused = jnp.sum(x * lin_ref[...] + (x * x) * v2neg_ref[...],
                    axis=-1, keepdims=True)                           # (TB, 1)

    out_ref[...] = (fused + sq_half + mlp + bias_ref[...]).astype(out_ref.dtype)


def factorization_mlp_forward(x, w_lin, b_lin, V, w1, b1, w2, b2,
                              *, block_b=512, mxu_dtype=jnp.bfloat16):
    """x: (B, I) f32.  Weights in PyTorch layouts:
       w_lin (1, I), b_lin (1,), V (I, F), w1 (H, I), b1 (H,), w2 (1, H), b2 (1,)."""
    B, I = x.shape
    H = w1.shape[0]
    F = V.shape[1]

    # --- one-time XLA-side parameter plumbing (no in-kernel transposes) -----
    w1_t = jnp.transpose(w1)                                     # (I, H)
    v_scaled = (0.5 ** 0.5) * V                                  # fold the 0.5
    wcat = jnp.concatenate([w1_t, v_scaled], axis=1).astype(mxu_dtype)  # (I, H+F)
    lin = w_lin.reshape(1, I).astype(jnp.float32)
    v2neg = (-0.5 * jnp.sum(V * V, axis=1)).reshape(1, I).astype(jnp.float32)
    b1_2 = b1.reshape(1, H).astype(jnp.float32)
    w2_2 = w2.reshape(1, H).astype(jnp.float32)
    bias = (b_lin.reshape(1, 1) + b2.reshape(1, 1)).astype(jnp.float32)

    x_mxu = x.astype(mxu_dtype)

    # --- batch tiling: big tiles, but keep >=2 grid steps when possible -----
    b_pad = _round_up(B, 8)
    tb = min(block_b, _round_up(max(b_pad // 2, 8), 8))
    b_pad = _round_up(b_pad, tb)
    if b_pad != B:
        x_mxu = jnp.pad(x_mxu, ((0, b_pad - B), (0, 0)))
    grid = (b_pad // tb,)

    def full(shape):
        return pl.BlockSpec(shape, lambda i: (0, 0))

    flops = 2 * b_pad * I * (H + F) + b_pad * (6 * I + 3 * H + 2 * F)
    bytes_accessed = (2 * b_pad * I + 2 * I * (H + F)
                      + 4 * (2 * I + 2 * H + 1) + 4 * b_pad)

    out = pl.pallas_call(
        fm_mlp_kernel,
        out_shape=jax.ShapeDtypeStruct((b_pad, 1), jnp.float32),
        grid=grid,
        in_specs=[
            pl.BlockSpec((tb, I), lambda i: (i, 0)),   # x (batch-tiled, bf16)
            full((I, H + F)),                          # [W1^T | sqrt(.5)*V]
            full((1, I)),                              # W_lin
            full((1, I)),                              # -0.5 * rowsum(V^2)
            full((1, H)),                              # b1
            full((1, H)),                              # W2
            full((1, 1)),                              # b_lin + b2
        ],
        out_specs=pl.BlockSpec((tb, 1), lambda i: (i, 0)),
        compiler_params=pltpu.CompilerParams(
            dimension_semantics=("parallel",)),
        cost_estimate=pl.CostEstimate(
            flops=flops, transcendentals=0, bytes_accessed=bytes_accessed),
    )(x_mxu, wcat, lin, v2neg, b1_2, w2_2, bias)

    return out[:B]


def _reference(x, w_lin, b_lin, V, w1, b1, w2, b2):
    linear_term = x @ w_lin.T + b_lin
    xv = x @ V
    x2v2 = (x * x) @ (V * V)
    interaction = 0.5 * jnp.sum(xv * xv - x2v2, axis=1, keepdims=True)
    h = jnp.maximum(x @ w1.T + b1, 0.0)
    mlp_out = h @ w2.T + b2
    return linear_term + interaction + mlp_out


if __name__ == "__main__":
    # Small shapes consistent with the module: batch=2, input_size=64,
    # hidden_size=128, factor_size=16.
    B, I, H, F = 2, 64, 128, 16

    key = jax.random.PRNGKey(0)
    kx, k1, k2, k3, k4, k5, k6, k7 = jax.random.split(key, 8)

    # "Bit-vector" style input (0/1 floats), matching the module's intent.
    x = jax.random.bernoulli(kx, 0.5, (B, I)).astype(jnp.float32)

    bound_i = 1.0 / (I ** 0.5)
    bound_h = 1.0 / (H ** 0.5)
    w_lin = jax.random.uniform(k1, (1, I), jnp.float32, -bound_i, bound_i)
    b_lin = jax.random.uniform(k2, (1,), jnp.float32, -bound_i, bound_i)
    V = 0.1 * jax.random.normal(k3, (I, F), jnp.float32)
    w1 = jax.random.uniform(k4, (H, I), jnp.float32, -bound_i, bound_i)
    b1 = jax.random.uniform(k5, (H,), jnp.float32, -bound_i, bound_i)
    w2 = jax.random.uniform(k6, (1, H), jnp.float32, -bound_h, bound_h)
    b2 = jax.random.uniform(k7, (1,), jnp.float32, -bound_h, bound_h)

    out = factorization_mlp_forward(x, w_lin, b_lin, V, w1, b1, w2, b2)
    out = jax.block_until_ready(out)

    ref = _reference(x, w_lin, b_lin, V, w1, b1, w2, b2)
    assert out.shape == (B, 1), out.shape
    # bf16 MXU operands vs. full-f32 reference: loose-but-meaningful tolerance
    # (a formula bug would be off by O(1); bf16 rounding is O(1e-2) here).
    assert jnp.allclose(out, ref, atol=5e-2, rtol=5e-2), (out, ref)

    print("KERNEL_OK")
</pallas_src>

<mosaic_0001>
module attributes {stable_mosaic.version = 11 : i64} {
  func.func @fm_mlp_kernel(%arg0: i32, %arg1: memref<8x64xbf16, #tpu.memory_space<vmem>>, %arg2: memref<64x144xbf16, #tpu.memory_space<vmem>>, %arg3: memref<1x64xf32, #tpu.memory_space<vmem>>, %arg4: memref<1x64xf32, #tpu.memory_space<vmem>>, %arg5: memref<1x128xf32, #tpu.memory_space<vmem>>, %arg6: memref<1x128xf32, #tpu.memory_space<vmem>>, %arg7: memref<1x1xf32, #tpu.memory_space<vmem>>, %arg8: memref<8x1xf32, #tpu.memory_space<vmem>>) attributes {dimension_semantics = [#tpu.dimension_semantics<parallel>], iteration_bounds = array<i64: 1>, scalar_prefetch = 0 : i64, scratch_operands = 0 : i64, tpu.core_type = #tpu.core_type<tc>, window_params = [{transform_indices = @transform_0, window_bounds = array<i64: 8, 64>}, {pipeline_mode = #tpu.pipeline_mode<synchronous>, transform_indices = @transform_1, window_bounds = array<i64: 64, 144>}, {pipeline_mode = #tpu.pipeline_mode<synchronous>, transform_indices = @transform_2, window_bounds = array<i64: 1, 64>}, {pipeline_mode = #tpu.pipeline_mode<synchronous>, transform_indices = @transform_3, window_bounds = array<i64: 1, 64>}, {pipeline_mode = #tpu.pipeline_mode<synchronous>, transform_indices = @transform_4, window_bounds = array<i64: 1, 128>}, {pipeline_mode = #tpu.pipeline_mode<synchronous>, transform_indices = @transform_5, window_bounds = array<i64: 1, 128>}, {pipeline_mode = #tpu.pipeline_mode<synchronous>, transform_indices = @transform_6, window_bounds = array<i64: 1, 1>}, {transform_indices = @transform_7, window_bounds = array<i64: 8, 1>}]} {
    %c0 = arith.constant 0 : index
    %c0_0 = arith.constant 0 : index
    %0 = vector.load %arg1[%c0, %c0_0] : memref<8x64xbf16, #tpu.memory_space<vmem>>, vector<8x64xbf16>
    %1 = arith.extf %0 : vector<8x64xbf16> to vector<8x64xf32>
    %c0_1 = arith.constant 0 : index
    %c0_2 = arith.constant 0 : index
    %2 = vector.load %arg2[%c0_1, %c0_2] : memref<64x144xbf16, #tpu.memory_space<vmem>>, vector<64x144xbf16>
    %cst = arith.constant dense<0.000000e+00> : vector<8x144xf32>
    %3 = tpu.matmul %0, %2, %cst {dimension_numbers = #tpu.dot_dimension_numbers<[1], [0], [0], [1], [0, 0, 1, 1], [], []>} : vector<8x64xbf16>, vector<64x144xbf16>, vector<8x144xf32> -> vector<8x144xf32>
    %4 = vector.extract_strided_slice %3 {offsets = [0, 0], sizes = [8, 128], strides = [1, 1]} : vector<8x144xf32> to vector<8x128xf32>
    %5 = vector.extract_strided_slice %3 {offsets = [0, 128], sizes = [8, 16], strides = [1, 1]} : vector<8x144xf32> to vector<8x16xf32>
    %c0_3 = arith.constant 0 : index
    %c0_4 = arith.constant 0 : index
    %6 = vector.load %arg5[%c0_3, %c0_4] : memref<1x128xf32, #tpu.memory_space<vmem>>, vector<1x128xf32>
    %7 = vector.broadcast %6 : vector<1x128xf32> to vector<8x128xf32>
    %8 = arith.addf %4, %7 : vector<8x128xf32>
    %cst_5 = arith.constant 0.000000e+00 : f32
    %9 = vector.broadcast %cst_5 : f32 to vector<8x128xf32>
    %10 = arith.maximumf %8, %9 : vector<8x128xf32>
    %c0_6 = arith.constant 0 : index
    %c0_7 = arith.constant 0 : index
    %11 = vector.load %arg6[%c0_6, %c0_7] : memref<1x128xf32, #tpu.memory_space<vmem>>, vector<1x128xf32>
    %12 = vector.broadcast %11 : vector<1x128xf32> to vector<8x128xf32>
    %13 = arith.mulf %10, %12 : vector<8x128xf32>
    %cst_8 = arith.constant dense<0.000000e+00> : vector<8xf32>
    %14 = vector.multi_reduction <add>, %13, %cst_8 [1] : vector<8x128xf32> to vector<8xf32>
    %15 = vector.shape_cast %14 : vector<8xf32> to vector<8x1xf32>
    %16 = arith.mulf %5, %5 : vector<8x16xf32>
    %cst_9 = arith.constant dense<0.000000e+00> : vector<8xf32>
    %17 = vector.multi_reduction <add>, %16, %cst_9 [1] : vector<8x16xf32> to vector<8xf32>
    %18 = vector.shape_cast %17 : vector<8xf32> to vector<8x1xf32>
    %c0_10 = arith.constant 0 : index
    %c0_11 = arith.constant 0 : index
    %19 = vector.load %arg3[%c0_10, %c0_11] : memref<1x64xf32, #tpu.memory_space<vmem>>, vector<1x64xf32>
    %20 = vector.broadcast %19 : vector<1x64xf32> to vector<8x64xf32>
    %21 = arith.mulf %1, %20 : vector<8x64xf32>
    %22 = arith.mulf %1, %1 : vector<8x64xf32>
    %c0_12 = arith.constant 0 : index
    %c0_13 = arith.constant 0 : index
    %23 = vector.load %arg4[%c0_12, %c0_13] : memref<1x64xf32, #tpu.memory_space<vmem>>, vector<1x64xf32>
    %24 = vector.broadcast %23 : vector<1x64xf32> to vector<8x64xf32>
    %25 = arith.mulf %22, %24 : vector<8x64xf32>
    %26 = arith.addf %21, %25 : vector<8x64xf32>
    %cst_14 = arith.constant dense<0.000000e+00> : vector<8xf32>
    %27 = vector.multi_reduction <add>, %26, %cst_14 [1] : vector<8x64xf32> to vector<8xf32>
    %28 = vector.shape_cast %27 : vector<8xf32> to vector<8x1xf32>
    %29 = arith.addf %28, %18 : vector<8x1xf32>
    %30 = arith.addf %29, %15 : vector<8x1xf32>
    %c0_15 = arith.constant 0 : index
    %c0_16 = arith.constant 0 : index
    %31 = vector.load %arg7[%c0_15, %c0_16] : memref<1x1xf32, #tpu.memory_space<vmem>>, vector<1x1xf32>
    %32 = vector.broadcast %31 : vector<1x1xf32> to vector<8x1xf32>
    %33 = arith.addf %30, %32 : vector<8x1xf32>
    %c0_17 = arith.constant 0 : index
    %c0_18 = arith.constant 0 : index
    %34 = vector.load %arg8[%c0_17, %c0_18] : memref<8x1xf32, #tpu.memory_space<vmem>>, vector<8x1xf32>
    tpu.vector_store %arg8[%c0_17, %c0_18], %33 {strides = array<i32>} : memref<8x1xf32, #tpu.memory_space<vmem>>, vector<8x1xf32>,
    return
  }
  func.func @transform_0(%arg0: i32) -> (i32, i32) {
    %c0_i32 = arith.constant 0 : i32
    %c0_i32_0 = arith.constant 0 : i32
    return %arg0, %c0_i32 : i32, i32
  }
  func.func @transform_1(%arg0: i32) -> (i32, i32) {
    %c0_i32 = arith.constant 0 : i32
    %c0_i32_0 = arith.constant 0 : i32
    %c0_i32_1 = arith.constant 0 : i32
    return %c0_i32, %c0_i32_0 : i32, i32
  }
  func.func @transform_2(%arg0: i32) -> (i32, i32) {
    %c0_i32 = arith.constant 0 : i32
    %c0_i32_0 = arith.constant 0 : i32
    %c0_i32_1 = arith.constant 0 : i32
    return %c0_i32, %c0_i32_0 : i32, i32
  }
  func.func @transform_3(%arg0: i32) -> (i32, i32) {
    %c0_i32 = arith.constant 0 : i32
    %c0_i32_0 = arith.constant 0 : i32
    %c0_i32_1 = arith.constant 0 : i32
    return %c0_i32, %c0_i32_0 : i32, i32
  }
  func.func @transform_4(%arg0: i32) -> (i32, i32) {
    %c0_i32 = arith.constant 0 : i32
    %c0_i32_0 = arith.constant 0 : i32
    %c0_i32_1 = arith.constant 0 : i32
    return %c0_i32, %c0_i32_0 : i32, i32
  }
  func.func @transform_5(%arg0: i32) -> (i32, i32) {
    %c0_i32 = arith.constant 0 : i32
    %c0_i32_0 = arith.constant 0 : i32
    %c0_i32_1 = arith.constant 0 : i32
    return %c0_i32, %c0_i32_0 : i32, i32
  }
  func.func @transform_6(%arg0: i32) -> (i32, i32) {
    %c0_i32 = arith.constant 0 : i32
    %c0_i32_0 = arith.constant 0 : i32
    %c0_i32_1 = arith.constant 0 : i32
    return %c0_i32, %c0_i32_0 : i32, i32
  }
  func.func @transform_7(%arg0: i32) -> (i32, i32) {
    %c0_i32 = arith.constant 0 : i32
    %c0_i32_0 = arith.constant 0 : i32
    return %arg0, %c0_i32 : i32, i32
  }
}

</mosaic_0001>

<llo_original>
// kernel: tpu_custom_call.1
$region0: #{tpu_custom_call.1}
  #allocation0 [shape = 'u32[]', space=smem, size = 0x4, offset = 0x4, fixed_abs, tag = 'smem constant byte address 0x4 - core index']
  #allocation1 [shape = 'u32[72,128]{1,0:T(1,128)}', space=vmem, size = 0x9000, scoped, tag = 'internal scratch']
  #allocation2 [shape = 'f32[1,1]{1,0:T(1,128)S(1)}', space=vmem, size = 0x200, scoped, tag = 'scoped memory for tpu_custom_call.1']
  %s0 = inlined_call_operand.hbm [shape: bf16[8,64], index: 0, kind: input, shape index: {}]
  %s1 = inlined_call_operand.hbm [shape: bf16[64,144], index: 1, kind: input, shape index: {}]
  %s2 = inlined_call_operand.vmem [shape: f32[1,64], index: 2, kind: input, shape index: {}]
  %s3 = inlined_call_operand.vmem [shape: f32[1,64], index: 3, kind: input, shape index: {}]
  %s4 = inlined_call_operand.vmem [shape: f32[1,128], index: 4, kind: input, shape index: {}]
  %s5 = inlined_call_operand.vmem [shape: f32[1,128], index: 5, kind: input, shape index: {}]
  %s6 = inlined_call_operand.<no memory space> [shape: f32[1,1], index: 6, kind: input, shape index: {}]
  %s7 = inlined_call_operand.vmem [shape: f32[8,1], index: 7, kind: output, shape index: {}]
  %s8 = sld [smem:[#allocation0]]
  $region46: #{tpu_custom_call.1} parent=0
    _
  %s10 = ssub.s32 1, %s8
  %s11 = scalar_select 0, %s10, %s8
  %v12 = vstv %s6
  %13 = vst [vmem:[#allocation2] sm:$0x1] %v12
  $region1: #{tpu_custom_call.1} parent=0
    #allocation3 [shape = 'u8[2048]{0}', space=vmem, size = 0x800, scoped, tag = 'input window, operand 0, single buffered']
    #allocation4 [shape = 's32[1]{0}', space=sflag, size = 0x4, scoped, tag = 'scoped memory for tpu_custom_call.1']
    #allocation5 [shape = 'u8[32768]{0}', space=vmem, size = 0x8000, scoped, tag = 'input window, operand 1, single buffered']
    #allocation6 [shape = 's32[1]{0}', space=sflag, size = 0x4, scoped, tag = 'scoped memory for tpu_custom_call.1']
    %14 = vsyncpa [#allocation4], 0
    %15 = vsyncpa [#allocation6], 0
    // Predicated region
    $region2: #{tpu_custom_call.1} parent=1 // pred_check
      _
    $region3: #{tpu_custom_call.1} parent=1 // pred_check_branch
      %17 = sbr.rel (0) target = $region5
    $region4: #{tpu_custom_call.1} parent=1 // pred_region
      %19 = vsyncadd [#allocation4], 0
      %s21 = sshll.u32 %s0, 4
      %s22 = int_to_ptr.hbm [resolvable:$true] %s21
      %s23 = sshll.u32 [#allocation3], 4
      %s24 = int_to_ptr.vmem [resolvable:$true] %s23
      %26 = dma.hbm_to_vmem [thread:$0]  %s22, 64, %s24, [#allocation4]
    $region5: #{tpu_custom_call.1} parent=1 // pred_fallthru
      _
    // Predicated region
    $region6: #{tpu_custom_call.1} parent=1 // pred_check
      _
    $region7: #{tpu_custom_call.1} parent=1 // pred_check_branch
      %28 = sbr.rel (0) target = $region9
    $region8: #{tpu_custom_call.1} parent=1 // pred_region
      %30 = vsyncadd [#allocation6], 0
      %s31 = sshll.u32 %s1, 4
      %s32 = int_to_ptr.hbm [resolvable:$true] %s31
      %s33 = sshll.u32 [#allocation5], 4
      %s34 = int_to_ptr.vmem [resolvable:$true] %s33
      %39 = dma.hbm_to_vmem [thread:$0]  %s32, 1024, %s34, [#allocation6], 128, 128, 8
    $region9: #{tpu_custom_call.1} parent=1 // pred_fallthru
      _
    // Predicated region
    $region10: #{tpu_custom_call.1} parent=1 // pred_check
      _
    $region11: #{tpu_custom_call.1} parent=1 // pred_check_branch
      %41 = sbr.rel (0) target = $region13
    $region12: #{tpu_custom_call.1} parent=1 // pred_region
      _
    $region13: #{tpu_custom_call.1} parent=1 // pred_fallthru
      _
    // Predicated region
    $region14: #{tpu_custom_call.1} parent=1 // pred_check
      _
    $region15: #{tpu_custom_call.1} parent=1 // pred_check_branch
      %43 = sbr.rel (0) target = $region17
    $region16: #{tpu_custom_call.1} parent=1 // pred_region
      _
    $region17: #{tpu_custom_call.1} parent=1 // pred_fallthru
      _
    // Predicated region
    $region18: #{tpu_custom_call.1} parent=1 // pred_check
      _
    $region19: #{tpu_custom_call.1} parent=1 // pred_check_branch
      %45 = sbr.rel (0) target = $region21
    $region20: #{tpu_custom_call.1} parent=1 // pred_region
      _
    $region21: #{tpu_custom_call.1} parent=1 // pred_fallthru
      _
    // Predicated region
    $region22: #{tpu_custom_call.1} parent=1 // pred_check
      _
    $region23: #{tpu_custom_call.1} parent=1 // pred_check_branch
      %47 = sbr.rel (0) target = $region25
    $region24: #{tpu_custom_call.1} parent=1 // pred_region
      _
    $region25: #{tpu_custom_call.1} parent=1 // pred_fallthru
      _
    // Predicated region
    $region26: #{tpu_custom_call.1} parent=1 // pred_check
      _
    $region27: #{tpu_custom_call.1} parent=1 // pred_check_branch
      %49 = sbr.rel (0) target = $region29
    $region28: #{tpu_custom_call.1} parent=1 // pred_region
      _
    $region29: #{tpu_custom_call.1} parent=1 // pred_fallthru
      _
    // Predicated region
    $region30: #{tpu_custom_call.1} parent=1 // pred_check
      _
    $region31: #{tpu_custom_call.1} parent=1 // pred_check_branch
      %51 = sbr.rel (0) target = $region33
    $region32: #{tpu_custom_call.1} parent=1 // pred_region
      %53 = dma.done [#allocation4], 64
    $region33: #{tpu_custom_call.1} parent=1 // pred_fallthru
      _
    // Predicated region
    $region34: #{tpu_custom_call.1} parent=1 // pred_check
      _
    $region35: #{tpu_custom_call.1} parent=1 // pred_check_branch
      %55 = sbr.rel (0) target = $region37
    $region36: #{tpu_custom_call.1} parent=1 // pred_region
      %57 = dma.done [#allocation6], 1024
    $region37: #{tpu_custom_call.1} parent=1 // pred_fallthru
      _
    %v59 = vld [vmem:[#allocation3] sm:$0xf]
    %v60 = vunpack.c.l.bf16 %v59
    %v61 = vld [vmem:[#allocation5] sm:$0xff]
    %v62 = vld [vmem:[#allocation5 + $0x8] sm:$0xff]
    %v63 = vld [vmem:[#allocation5 + $0x10] sm:$0xff]
    %v64 = vld [vmem:[#allocation5 + $0x18] sm:$0xff]
    %v65 = vld [vmem:[#allocation5 + $0x20] sm:$0xff]
    %v66 = vld [vmem:[#allocation5 + $0x28] sm:$0xff]
    %v67 = vld [vmem:[#allocation5 + $0x30] sm:$0xff]
    %v68 = vld [vmem:[#allocation5 + $0x38] sm:$0xff]
    %v77 = vunpack.c.l.b16 %v61
    %v78 = vunpack.c.h.b16 %v61
    %v79 = vunpack.c.l.b16 %v62
    %v80 = vunpack.c.h.b16 %v62
    %v81 = vunpack.c.l.b16 %v63
    %v82 = vunpack.c.h.b16 %v63
    %v83 = vunpack.c.l.b16 %v64
    %v84 = vunpack.c.h.b16 %v64
    %v85 = vunpack.c.l.b16 %v65
    %v86 = vunpack.c.h.b16 %v65
    %v87 = vunpack.c.l.b16 %v66
    %v88 = vunpack.c.h.b16 %v66
    %v89 = vunpack.c.l.b16 %v67
    %v90 = vunpack.c.h.b16 %v67
    %v91 = vunpack.c.l.b16 %v68
    %v92 = vunpack.c.h.b16 %v68
    %v93 = vpack.c.b16 %v79, %v77
    %v94 = vpack.c.b16 %v80, %v78
    %v95 = vpack.c.b16 %v83, %v81
    %v96 = vpack.c.b16 %v84, %v82
    %v97 = vpack.c.b16 %v87, %v85
    %v98 = vpack.c.b16 %v88, %v86
    %v99 = vpack.c.b16 %v91, %v89
    %v100 = vpack.c.b16 %v92, %v90
    %vm109 = vcmask 523264
    %v111 = vsel %vm109, %v59, 0
    %113 = vmatpush.bf16.msra.mxu0 0
    %114 = vmatpush.bf16.msra.mxu0 0
    %115 = vmatpush.bf16.msra.mxu0 0
    %116 = vmatpush.bf16.msra.mxu0 0
    %117 = vmatpush.bf16.msra.mxu0 %v99
    %118 = vmatpush.bf16.msra.mxu0 %v97
    %119 = vmatpush.bf16.msra.mxu0 %v95
    %120 = vmatpush.bf16.msra.mxu0 %v93
    %121 = vmatmul.bf16.gmra.mxu0 %v111
    %v122 = vpop.f32.mrf.mxu0
    %v123 = vadd.f32 0.0, %v122
    %v124 = vpop.f32.mrf.mxu0
    %125 = vdwg.mxu0
    %126 = vmatpush.bf16.msra.mxu0 0
    %127 = vmatpush.bf16.msra.mxu0 0
    %128 = vmatpush.bf16.msra.mxu0 0
    %129 = vmatpush.bf16.msra.mxu0 0
    %130 = vmatpush.bf16.msra.mxu0 %v100
    %131 = vmatpush.bf16.msra.mxu0 %v98
    %132 = vmatpush.bf16.msra.mxu0 %v96
    %133 = vmatpush.bf16.msra.mxu0 %v94
    %134 = vmatmul.bf16.gmra.mxu0 %v111
    %v135 = vpop.f32.mrf.mxu0
    %v136 = vadd.f32 0.0, %v135
    %v137 = vpop.f32.mrf.mxu0
    %138 = vdwg.mxu0
    %v139 = vld [vmem:[%s4] sm:$0x1]
    %v141 = vperm.slane %v139, 0
    %v143 = vadd.f32 %v123, %v141
    %v144 = vmax.f32 %v143, 0.0
    %v145 = vld [vmem:[%s5] sm:$0x1]
    %v147 = vperm.slane %v145, 0
    %v149 = vmul.f32 %v144, %v147
    %150 = vadd.xlane.f32.xlu0 %v149
    %v151 = vpop.xlane.xlu0 %150
    %v152 = vmul.f32 %v136, %v136
    %vm153 = vcmask 130048
    %v154 = vsel %vm153, %v152, 0.0
    %155 = vadd.xlane.f32.xlu0 %v154
    %v156 = vpop.xlane.xlu0 %155
    %v157 = vld [vmem:[%s2] sm:$0x1]
    %v159 = vperm.slane %v157, 0
    %v161 = vmul.f32 %v60, %v159
    %v162 = vmul.f32 %v60, %v60
    %v163 = vld [vmem:[%s3] sm:$0x1]
    %v165 = vperm.slane %v163, 0
    %v167 = vmul.f32 %v162, %v165
    %v168 = vadd.f32 %v161, %v167
    %v169 = vsel %vm109, %v168, 0.0
    %170 = vadd.xlane.f32.xlu0 %v169
    %v171 = vpop.xlane.xlu0 %170
    %v172 = vadd.f32 %v171, %v156
    %v173 = vadd.f32 %v172, %v151
    %v174 = vld [vmem:[#allocation2] sm:$0x1]
    %v176 = vperm.slane %v174, 0
    %v178 = vadd.f32 %v173, %v176
    %vm179 = vcmask 7168
    %180 = vst.msk [vmem:[%s7] sm:$0xff] %vm179, %v178
    // Predicated region
    $region38: #{tpu_custom_call.1} parent=1 // pred_check
      _
    $region39: #{tpu_custom_call.1} parent=1 // pred_check_branch
      %182 = sbr.rel (0) target = $region41
    $region40: #{tpu_custom_call.1} parent=1 // pred_region
      _
    $region41: #{tpu_custom_call.1} parent=1 // pred_fallthru
      _
    // Predicated region
    $region42: #{tpu_custom_call.1} parent=1 // pred_check
      _
    $region43: #{tpu_custom_call.1} parent=1 // pred_check_branch
      %184 = sbr.rel (0) target = $region45
    $region44: #{tpu_custom_call.1} parent=1 // pred_region
      _
    $region45: #{tpu_custom_call.1} parent=1 // pred_fallthru
      _
    %185 = vsyncpa [#allocation4], 1
    %186 = vsyncpa [#allocation6], 1

</llo_original>
